<compile_context>
chip_gen: v6e
topology: v6e:2x2x1
jax: 0.10.0
libtpu: 0.0.40
codegen_flags: <defaults>
</compile_context>

<pallas_src>
import functools

import jax
import jax.numpy as jnp
from jax.experimental import pallas as pl
from jax.experimental.pallas import tpu as pltpu

LN_EPS = 1e-5


def _layernorm(y, gamma, beta):
    mu = jnp.mean(y, axis=-1, keepdims=True)
    var = jnp.mean((y - mu) ** 2, axis=-1, keepdims=True)
    return (y - mu) * jax.lax.rsqrt(var + LN_EPS) * gamma + beta


def _round_up(x, m):
    return (x + m - 1) // m * m


def _choose_tile(L, block):
    """Pick a sublane-aligned tile T and a padded length L_pad that is a multiple of T."""
    block = max(8, (int(block) // 8) * 8)
    L8 = _round_up(L, 8)
    if L8 <= block:
        return L8, L8
    return block, _round_up(L, block)


def _pick_ff_chunk(H):
    """Lane-dense hidden-dim chunk for the FFN epilogue (bounds the live h1 slab)."""
    for c in (512, 256, 128):
        if H > c and H % c == 0:
            return c
    return H


def _vmem_limit_bytes():
    """Generation-aware VMEM limit: ~80% of physical capacity, floor of 32 MiB."""
    try:
        cap = int(pltpu.get_tpu_info().vmem_capacity_bytes)
    except Exception:
        cap = 128 * 1024 * 1024
    return max(32 * 1024 * 1024, int(cap * 0.8))


def _exp_dtype():
    """bf16 softmax exponentials on v6e/v7x (bf16 EUP/VPU); f32 on older chips (v5e)."""
    try:
        kind = jax.devices()[0].device_kind.lower()
    except Exception:
        return jnp.float32
    if "v6" in kind or "v7" in kind or "7x" in kind:
        return jnp.bfloat16
    return jnp.float32


@functools.lru_cache(maxsize=None)
def _weight_pipe_kwargs():
    """Single-buffer constant weight inputs (pl.Buffered(1)) if this JAX supports it."""
    try:
        kwargs = {"pipeline_mode": pl.Buffered(1)}

        def _probe(w_ref, o_ref):
            o_ref[...] = w_ref[...] + 1.0

        out = pl.pallas_call(
            _probe,
            out_shape=jax.ShapeDtypeStruct((8, 128), jnp.float32),
            grid=(2,),
            in_specs=[pl.BlockSpec((8, 128), lambda i: (0, 0), **kwargs)],
            out_specs=pl.BlockSpec((8, 128), lambda i: (0, 0)),
        )(jnp.zeros((8, 128), jnp.float32))
        jax.block_until_ready(out)
        return dict(kwargs)
    except Exception:
        return {}


# --------------------------- kernel 1: QKV projection ---------------------------
def qkv_proj_kernel(x_ref, wq_ref, wk_ref, wv_ref, q_ref, k_ref, v_ref):
    """Project one token tile into head-major bf16 Q/K/V (runs once per token tile)."""
    bf16, f32 = jnp.bfloat16, jnp.float32
    TP = x_ref.shape[1]
    heads, d = q_ref.shape[1], q_ref.shape[3]
    xb = x_ref[0].astype(bf16)                                       # (TP, C)
    for w_ref, o_ref in ((wq_ref, q_ref), (wk_ref, k_ref), (wv_ref, v_ref)):
        p = jnp.dot(xb, w_ref[...], preferred_element_type=f32)      # (TP, heads*d)
        o_ref[0] = p.reshape(TP, heads, d).transpose(1, 0, 2).astype(o_ref.dtype)


# ----------------- kernel 2: flash attention + post-norm + FFN + post-norm -----------------
def attn_ffn_kernel(q_ref, k_ref, v_ref, xq_ref,
                    wout_ref, bout_ref, g1_ref, b1_ref,
                    wff1_ref, bff1_ref, wff2_ref, bff2_ref, g2_ref, b2_ref,
                    o_ref, m_scr, l_scr, acc_scr,
                    *, seq_len, block_k, ff_chunk, mask_keys, exp_dtype):
    f32, bf16 = jnp.float32, jnp.bfloat16
    ki = pl.program_id(2)
    nk = pl.num_programs(2)
    heads, TQ, d = q_ref.shape[1], q_ref.shape[2], q_ref.shape[3]
    inner = heads * d

    # ---- per-(batch, q-tile) init of the online-softmax state
    @pl.when(ki == 0)
    def _init():
        m_scr[...] = jnp.full(m_scr.shape, -jnp.inf, dtype=m_scr.dtype)
        l_scr[...] = jnp.zeros(l_scr.shape, dtype=l_scr.dtype)
        acc_scr[...] = jnp.zeros(acc_scr.shape, dtype=acc_scr.dtype)

    qh = q_ref[0]                     # (h, TQ, d) bf16; 1/sqrt(d) already folded into wq
    kh = k_ref[0]                     # (h, TK, d) bf16 (precomputed, head-major)
    vh = v_ref[0]                     # (h, TK, d) bf16

    dots = jnp.einsum("hqd,hkd->hqk", qh, kh, preferred_element_type=f32)
    if mask_keys:                     # static: only present when L was padded
        key_idx = ki * block_k + jax.lax.broadcasted_iota(jnp.int32, dots.shape, 2)
        dots = jnp.where(key_idx < seq_len, dots, -1e30)

    m_prev = m_scr[...]
    m_new = jnp.maximum(m_prev, jnp.max(dots, axis=-1, keepdims=True))
    alpha = jnp.exp(m_prev - m_new)
    p = jnp.exp((dots - m_new).astype(exp_dtype))                    # bf16 EUP on v6e/v7x
    l_scr[...] = alpha * l_scr[...] + jnp.sum(p.astype(f32), axis=-1, keepdims=True)
    acc_scr[...] = alpha * acc_scr[...] + jnp.einsum(
        "hqk,hkd->hqd", p.astype(bf16), vh, preferred_element_type=f32)
    m_scr[...] = m_new

    # ---- finalize: output projection + post-norm residual + chunked FFN + post-norm residual
    @pl.when(ki == nk - 1)
    def _finalize():
        attn = acc_scr[...] * pl.reciprocal(l_scr[...], approx=True)   # (h, TQ, d)
        attn_out = attn.transpose(1, 0, 2).reshape(TQ, inner)          # 'h q d -> q (h d)'
        out = jnp.dot(attn_out.astype(bf16), wout_ref[...],
                      preferred_element_type=f32) + bout_ref[...]
        x = xq_ref[0].astype(f32)
        y = _layernorm(x + out, g1_ref[...], b1_ref[...])               # norm(x + attn(x))

        yb = y.astype(bf16)
        C = y.shape[-1]
        H = wff1_ref.shape[1]
        h2 = jnp.zeros((TQ, C), f32)
        for c in range(H // ff_chunk):      # static hidden-dim chunks -> bounded live set
            lo, hi = c * ff_chunk, (c + 1) * ff_chunk
            h1c = jnp.dot(yb, wff1_ref[:, lo:hi],
                          preferred_element_type=f32) + bff1_ref[:, lo:hi]
            h1c = jax.nn.gelu(h1c, approximate=False)   # nn.GELU() default = exact erf GELU
            h2 = h2 + jnp.dot(h1c.astype(bf16), wff2_ref[lo:hi, :],
                              preferred_element_type=f32)
        h2 = h2 + bff2_ref[...]
        z = _layernorm(y + h2, g2_ref[...], b2_ref[...])                # norm(y + ff(y))
        o_ref[0] = z.astype(o_ref.dtype)


# ----------------------------------- wrapper -----------------------------------
def transformer_block(x, params, *, heads, head_dim, block=128):
    B, L, C = x.shape
    inner = heads * head_dim
    H = params["wff1"].shape[1]
    f32, bf16 = jnp.float32, jnp.bfloat16

    T, L_pad = _choose_tile(L, block)
    nt = L_pad // T
    x_p = x if L_pad == L else jnp.pad(x, ((0, 0), (0, L_pad - L), (0, 0)))

    # Split the fused to_qkv weight, fold 1/sqrt(d) into wq, keep matmul weights bf16.
    scale = head_dim ** (-0.5)
    wqkv = params["wqkv"].astype(f32)
    wq = (wqkv[:, :inner] * scale).astype(bf16)
    wk = wqkv[:, inner:2 * inner].astype(bf16)
    wv = wqkv[:, 2 * inner:].astype(bf16)

    pipe = _weight_pipe_kwargs()            # {"pipeline_mode": pl.Buffered(1)} if supported
    vmem_limit = _vmem_limit_bytes()

    # ---- kernel 1: QKV projection into head-major bf16 layout, once per token tile ----
    qkv_shape = jax.ShapeDtypeStruct((B, heads, L_pad, head_dim), bf16)
    qkv_block = pl.BlockSpec((1, heads, T, head_dim), lambda b, t: (b, 0, t, 0))
    w2 = lambda a: pl.BlockSpec(a.shape, lambda b, t: (0, 0), **pipe)

    qh, kh, vh = pl.pallas_call(
        qkv_proj_kernel,
        out_shape=(qkv_shape, qkv_shape, qkv_shape),
        grid=(B, nt),
        in_specs=[pl.BlockSpec((1, T, C), lambda b, t: (b, t, 0)),
                  w2(wq), w2(wk), w2(wv)],
        out_specs=(qkv_block, qkv_block, qkv_block),
        compiler_params=pltpu.CompilerParams(
            dimension_semantics=("parallel", "parallel"),
            vmem_limit_bytes=vmem_limit),
    )(x_p, wq, wk, wv)

    # ---- kernel 2: flash attention + out-proj + LN + chunked FFN + LN ----
    weights = [
        params["wout"].astype(bf16), params["bout"].reshape(1, -1).astype(f32),
        params["g1"].reshape(1, -1).astype(f32), params["b1"].reshape(1, -1).astype(f32),
        params["wff1"].astype(bf16), params["bff1"].reshape(1, -1).astype(f32),
        params["wff2"].astype(bf16), params["bff2"].reshape(1, -1).astype(f32),
        params["g2"].reshape(1, -1).astype(f32), params["b2"].reshape(1, -1).astype(f32),
    ]
    w3 = lambda a: pl.BlockSpec(a.shape, lambda b, qi, ki: (0, 0), **pipe)

    kernel = functools.partial(
        attn_ffn_kernel, seq_len=L, block_k=T, ff_chunk=_pick_ff_chunk(H),
        mask_keys=(L_pad != L), exp_dtype=_exp_dtype())

    flops = int(4 * B * heads * L_pad * L_pad * head_dim        # QK^T + PV
                + 2 * B * L_pad * inner * C                     # output projection
                + 4 * B * L_pad * C * H)                        # FFN
    transcendentals = int(B * heads * L_pad * L_pad + B * L_pad * H)
    bytes_accessed = int(3 * B * heads * L_pad * head_dim * 2   # q, k, v (bf16)
                         + 2 * B * L_pad * C * 4                # residual in + output
                         + sum(int(w.size) * w.dtype.itemsize for w in weights))

    out = pl.pallas_call(
        kernel,
        out_shape=jax.ShapeDtypeStruct((B, L_pad, C), x.dtype),
        grid=(B, nt, nt),
        in_specs=[pl.BlockSpec((1, heads, T, head_dim), lambda b, qi, ki: (b, 0, qi, 0)),
                  pl.BlockSpec((1, heads, T, head_dim), lambda b, qi, ki: (b, 0, ki, 0)),
                  pl.BlockSpec((1, heads, T, head_dim), lambda b, qi, ki: (b, 0, ki, 0)),
                  pl.BlockSpec((1, T, C), lambda b, qi, ki: (b, qi, 0))]
                 + [w3(w) for w in weights],
        out_specs=pl.BlockSpec((1, T, C), lambda b, qi, ki: (b, qi, 0)),
        scratch_shapes=[pltpu.VMEM((heads, T, 1), f32),            # online-softmax max
                        pltpu.VMEM((heads, T, 1), f32),            # online-softmax sum
                        pltpu.VMEM((heads, T, head_dim), f32)],    # output accumulator
        compiler_params=pltpu.CompilerParams(
            dimension_semantics=("parallel", "parallel", "arbitrary"),
            vmem_limit_bytes=vmem_limit),
        cost_estimate=pl.CostEstimate(flops=flops, transcendentals=transcendentals,
                                      bytes_accessed=bytes_accessed),
    )(qh, kh, vh, x_p, *weights)

    return out if L_pad == L else out[:, :L, :]


# ---------------- pure-JAX reference (for correctness check) ----------------
def reference(x, p, *, heads, head_dim):
    inner = heads * head_dim
    scale = head_dim ** (-0.5)
    B, L, C = x.shape

    qkv = jnp.einsum("blc,cd->bld", x, p["wqkv"])
    q, k, v = jnp.split(qkv, 3, axis=-1)

    def split_heads(t):
        return t.reshape(B, L, heads, head_dim).transpose(0, 2, 1, 3)

    q, k, v = map(split_heads, (q, k, v))
    dots = jnp.einsum("bhid,bhjd->bhij", q, k) * scale
    attn = jax.nn.softmax(dots, axis=-1)
    out = jnp.einsum("bhij,bhjd->bhid", attn, v)
    out = out.transpose(0, 2, 1, 3).reshape(B, L, inner)
    out = jnp.einsum("bli,ic->blc", out, p["wout"]) + p["bout"]

    def ln(y, g, b):
        mu = jnp.mean(y, axis=-1, keepdims=True)
        var = jnp.mean((y - mu) ** 2, axis=-1, keepdims=True)
        return (y - mu) * jax.lax.rsqrt(var + LN_EPS) * g + b

    y = ln(x + out, p["g1"], p["b1"])
    h1 = jax.nn.gelu(jnp.einsum("blc,ch->blh", y, p["wff1"]) + p["bff1"], approximate=False)
    h2 = jnp.einsum("blh,hc->blc", h1, p["wff2"]) + p["bff2"]
    return ln(y + h2, p["g2"], p["b2"])


if __name__ == "__main__":
    key = jax.random.PRNGKey(0)

    def make_params(k, dim, heads, head_dim, hidden_dim):
        inner = heads * head_dim
        ks = jax.random.split(k, 7)
        init = lambda kk, shape, s=0.05: (s * jax.random.normal(kk, shape)).astype(jnp.float32)
        return {
            "wqkv": init(ks[0], (dim, 3 * inner)),
            "wout": init(ks[1], (inner, dim)),
            "bout": init(ks[2], (1, dim)),
            "g1": jnp.ones((1, dim), jnp.float32),
            "b1": jnp.zeros((1, dim), jnp.float32),
            "wff1": init(ks[3], (dim, hidden_dim)),
            "bff1": init(ks[4], (1, hidden_dim)),
            "wff2": init(ks[5], (hidden_dim, dim)),
            "bff2": init(ks[6], (1, dim)),
            "g2": jnp.ones((1, dim), jnp.float32),
            "b2": jnp.zeros((1, dim), jnp.float32),
        }

    dim, heads, head_dim, hidden_dim = 32, 4, 8, 64
    k_p1, k_x1, k_p2, k_x2 = jax.random.split(key, 4)

    # Test 1: toy ViT block (B=2, L=8) — single (q, kv) tile per batch element.
    B, L = 2, 8
    params = make_params(k_p1, dim, heads, head_dim, hidden_dim)
    x = jax.random.normal(k_x1, (B, L, dim), jnp.float32)
    out = jax.block_until_ready(transformer_block(x, params, heads=heads, head_dim=head_dim))
    ref = reference(x, params, heads=heads, head_dim=head_dim)
    assert out.shape == (B, L, dim)
    err1 = float(jnp.max(jnp.abs(out - ref)))
    assert jnp.allclose(out, ref, atol=3e-2, rtol=3e-2), f"test1 mismatch: max abs err {err1}"

    # Test 2: multi-tile flash path + key-padding mask (L=12 padded to 16, grid (2,2,2)).
    B2, L2 = 2, 12
    params2 = make_params(k_p2, dim, heads, head_dim, hidden_dim)
    x2 = jax.random.normal(k_x2, (B2, L2, dim), jnp.float32)
    out2 = jax.block_until_ready(
        transformer_block(x2, params2, heads=heads, head_dim=head_dim, block=8))
    ref2 = reference(x2, params2, heads=heads, head_dim=head_dim)
    assert out2.shape == (B2, L2, dim)
    err2 = float(jnp.max(jnp.abs(out2 - ref2)))
    assert jnp.allclose(out2, ref2, atol=3e-2, rtol=3e-2), f"test2 mismatch: max abs err {err2}"

    print("KERNEL_OK")
</pallas_src>

<mosaic_0001>
module attributes {stable_mosaic.version = 11 : i64} {
  func.func @_probe(%arg0: i32, %arg1: memref<8x128xf32, #tpu.memory_space<vmem>>, %arg2: memref<8x128xf32, #tpu.memory_space<vmem>>) attributes {dimension_semantics = [#tpu.dimension_semantics<arbitrary>], iteration_bounds = array<i64: 2>, scalar_prefetch = 0 : i64, scratch_operands = 0 : i64, tpu.core_type = #tpu.core_type<tc>, window_params = [{pipeline_mode = #tpu.pipeline_mode<synchronous>, transform_indices = @transform_0, window_bounds = array<i64: 8, 128>}, {pipeline_mode = #tpu.pipeline_mode<synchronous>, transform_indices = @transform_1, window_bounds = array<i64: 8, 128>}]} {
    %c0 = arith.constant 0 : index
    %c0_0 = arith.constant 0 : index
    %0 = vector.load %arg1[%c0, %c0_0] : memref<8x128xf32, #tpu.memory_space<vmem>>, vector<8x128xf32>
    %cst = arith.constant 1.000000e+00 : f32
    %1 = vector.broadcast %cst : f32 to vector<8x128xf32>
    %2 = arith.addf %0, %1 : vector<8x128xf32>
    %c0_1 = arith.constant 0 : index
    %c0_2 = arith.constant 0 : index
    %3 = vector.load %arg2[%c0_1, %c0_2] : memref<8x128xf32, #tpu.memory_space<vmem>>, vector<8x128xf32>
    tpu.vector_store %arg2[%c0_1, %c0_2], %2 {strides = array<i32>} : memref<8x128xf32, #tpu.memory_space<vmem>>, vector<8x128xf32>,
    return
  }
  func.func @transform_0(%arg0: i32) -> (i32, i32) {
    %c0_i32 = arith.constant 0 : i32
    %c0_i32_0 = arith.constant 0 : i32
    %c0_i32_1 = arith.constant 0 : i32
    return %c0_i32, %c0_i32_0 : i32, i32
  }
  func.func @transform_1(%arg0: i32) -> (i32, i32) {
    %c0_i32 = arith.constant 0 : i32
    %c0_i32_0 = arith.constant 0 : i32
    %c0_i32_1 = arith.constant 0 : i32
    return %c0_i32, %c0_i32_0 : i32, i32
  }
}

module attributes {stable_mosaic.version = 11 : i64} {
  func.func @qkv_proj_kernel(%arg0: i32, %arg1: i32, %arg2: memref<1x8x32xf32, #tpu.memory_space<vmem>>, %arg3: memref<32x32xbf16, #tpu.memory_space<vmem>>, %arg4: memref<32x32xbf16, #tpu.memory_space<vmem>>, %arg5: memref<32x32xbf16, #tpu.memory_space<vmem>>, %arg6: memref<1x4x8x8xbf16, #tpu.memory_space<vmem>>, %arg7: memref<1x4x8x8xbf16, #tpu.memory_space<vmem>>, %arg8: memref<1x4x8x8xbf16, #tpu.memory_space<vmem>>) attributes {dimension_semantics = [#tpu.dimension_semantics<parallel>, #tpu.dimension_semantics<parallel>], iteration_bounds = array<i64: 2, 1>, scalar_prefetch = 0 : i64, scratch_operands = 0 : i64, tpu.core_type = #tpu.core_type<tc>, window_params = [{transform_indices = @transform_0, window_bounds = array<i64: 1, 8, 32>}, {pipeline_mode = #tpu.pipeline_mode<synchronous>, transform_indices = @transform_1, window_bounds = array<i64: 32, 32>}, {pipeline_mode = #tpu.pipeline_mode<synchronous>, transform_indices = @transform_2, window_bounds = array<i64: 32, 32>}, {pipeline_mode = #tpu.pipeline_mode<synchronous>, transform_indices = @transform_3, window_bounds = array<i64: 32, 32>}, {transform_indices = @transform_4, window_bounds = array<i64: 1, 4, 8, 8>}, {transform_indices = @transform_5, window_bounds = array<i64: 1, 4, 8, 8>}, {transform_indices = @transform_6, window_bounds = array<i64: 1, 4, 8, 8>}]} {
    %c0 = arith.constant 0 : index
    %c0_0 = arith.constant 0 : index
    %c0_1 = arith.constant 0 : index
    %0 = vector.load %arg2[%c0, %c0_0, %c0_1] : memref<1x8x32xf32, #tpu.memory_space<vmem>>, vector<1x8x32xf32>
    %1 = vector.shape_cast %0 : vector<1x8x32xf32> to vector<8x32xf32>
    %2 = arith.truncf %1 : vector<8x32xf32> to vector<8x32xbf16>
    %c0_2 = arith.constant 0 : index
    %c0_3 = arith.constant 0 : index
    %3 = vector.load %arg3[%c0_2, %c0_3] : memref<32x32xbf16, #tpu.memory_space<vmem>>, vector<32x32xbf16>
    %cst = arith.constant dense<0.000000e+00> : vector<8x32xf32>
    %4 = tpu.matmul %2, %3, %cst {dimension_numbers = #tpu.dot_dimension_numbers<[1], [0], [0], [1], [0, 0, 1, 1], [], []>} : vector<8x32xbf16>, vector<32x32xbf16>, vector<8x32xf32> -> vector<8x32xf32>
    %5 = vector.shape_cast %4 : vector<8x32xf32> to vector<8x4x8xf32>
    %6 = tpu.transpose %5, [1, 0, 2] : vector<8x4x8xf32> -> vector<4x8x8xf32>
    %7 = arith.truncf %6 : vector<4x8x8xf32> to vector<4x8x8xbf16>
    %c0_4 = arith.constant 0 : index
    %c0_5 = arith.constant 0 : index
    %c0_6 = arith.constant 0 : index
    %c0_7 = arith.constant 0 : index
    %8 = vector.load %arg6[%c0_4, %c0_5, %c0_6, %c0_7] : memref<1x4x8x8xbf16, #tpu.memory_space<vmem>>, vector<1x4x8x8xbf16>
    %9 = vector.shape_cast %8 : vector<1x4x8x8xbf16> to vector<4x8x8xbf16>
    %10 = vector.shape_cast %7 : vector<4x8x8xbf16> to vector<1x4x8x8xbf16>
    tpu.vector_store %arg6[%c0_4, %c0_5, %c0_6, %c0_7], %10 {strides = array<i32>} : memref<1x4x8x8xbf16, #tpu.memory_space<vmem>>, vector<1x4x8x8xbf16>,
    %c0_8 = arith.constant 0 : index
    %c0_9 = arith.constant 0 : index
    %11 = vector.load %arg4[%c0_8, %c0_9] : memref<32x32xbf16, #tpu.memory_space<vmem>>, vector<32x32xbf16>
    %cst_10 = arith.constant dense<0.000000e+00> : vector<8x32xf32>
    %12 = tpu.matmul %2, %11, %cst_10 {dimension_numbers = #tpu.dot_dimension_numbers<[1], [0], [0], [1], [0, 0, 1, 1], [], []>} : vector<8x32xbf16>, vector<32x32xbf16>, vector<8x32xf32> -> vector<8x32xf32>
    %13 = vector.shape_cast %12 : vector<8x32xf32> to vector<8x4x8xf32>
    %14 = tpu.transpose %13, [1, 0, 2] : vector<8x4x8xf32> -> vector<4x8x8xf32>
    %15 = arith.truncf %14 : vector<4x8x8xf32> to vector<4x8x8xbf16>
    %c0_11 = arith.constant 0 : index
    %c0_12 = arith.constant 0 : index
    %c0_13 = arith.constant 0 : index
    %c0_14 = arith.constant 0 : index
    %16 = vector.load %arg7[%c0_11, %c0_12, %c0_13, %c0_14] : memref<1x4x8x8xbf16, #tpu.memory_space<vmem>>, vector<1x4x8x8xbf16>
    %17 = vector.shape_cast %16 : vector<1x4x8x8xbf16> to vector<4x8x8xbf16>
    %18 = vector.shape_cast %15 : vector<4x8x8xbf16> to vector<1x4x8x8xbf16>
    tpu.vector_store %arg7[%c0_11, %c0_12, %c0_13, %c0_14], %18 {strides = array<i32>} : memref<1x4x8x8xbf16, #tpu.memory_space<vmem>>, vector<1x4x8x8xbf16>,
    %c0_15 = arith.constant 0 : index
    %c0_16 = arith.constant 0 : index
    %19 = vector.load %arg5[%c0_15, %c0_16] : memref<32x32xbf16, #tpu.memory_space<vmem>>, vector<32x32xbf16>
    %cst_17 = arith.constant dense<0.000000e+00> : vector<8x32xf32>
    %20 = tpu.matmul %2, %19, %cst_17 {dimension_numbers = #tpu.dot_dimension_numbers<[1], [0], [0], [1], [0, 0, 1, 1], [], []>} : vector<8x32xbf16>, vector<32x32xbf16>, vector<8x32xf32> -> vector<8x32xf32>
    %21 = vector.shape_cast %20 : vector<8x32xf32> to vector<8x4x8xf32>
    %22 = tpu.transpose %21, [1, 0, 2] : vector<8x4x8xf32> -> vector<4x8x8xf32>
    %23 = arith.truncf %22 : vector<4x8x8xf32> to vector<4x8x8xbf16>
    %c0_18 = arith.constant 0 : index
    %c0_19 = arith.constant 0 : index
    %c0_20 = arith.constant 0 : index
    %c0_21 = arith.constant 0 : index
    %24 = vector.load %arg8[%c0_18, %c0_19, %c0_20, %c0_21] : memref<1x4x8x8xbf16, #tpu.memory_space<vmem>>, vector<1x4x8x8xbf16>
    %25 = vector.shape_cast %24 : vector<1x4x8x8xbf16> to vector<4x8x8xbf16>
    %26 = vector.shape_cast %23 : vector<4x8x8xbf16> to vector<1x4x8x8xbf16>
    tpu.vector_store %arg8[%c0_18, %c0_19, %c0_20, %c0_21], %26 {strides = array<i32>} : memref<1x4x8x8xbf16, #tpu.memory_space<vmem>>, vector<1x4x8x8xbf16>,
    return
  }
  func.func @transform_0(%arg0: i32, %arg1: i32) -> (i32, i32, i32) {
    %c0_i32 = arith.constant 0 : i32
    %c0_i32_0 = arith.constant 0 : i32
    return %arg0, %arg1, %c0_i32 : i32, i32, i32
  }
  func.func @transform_1(%arg0: i32, %arg1: i32) -> (i32, i32) {
    %c0_i32 = arith.constant 0 : i32
    %c0_i32_0 = arith.constant 0 : i32
    %c0_i32_1 = arith.constant 0 : i32
    return %c0_i32, %c0_i32_0 : i32, i32
  }
  func.func @transform_2(%arg0: i32, %arg1: i32) -> (i32, i32) {
    %c0_i32 = arith.constant 0 : i32
    %c0_i32_0 = arith.constant 0 : i32
    %c0_i32_1 = arith.constant 0 : i32
    return %c0_i32, %c0_i32_0 : i32, i32
  }
  func.func @transform_3(%arg0: i32, %arg1: i32) -> (i32, i32) {
    %c0_i32 = arith.constant 0 : i32
    %c0_i32_0 = arith.constant 0 : i32
    %c0_i32_1 = arith.constant 0 : i32
    return %c0_i32, %c0_i32_0 : i32, i32
  }
  func.func @transform_4(%arg0: i32, %arg1: i32) -> (i32, i32, i32, i32) {
    %c0_i32 = arith.constant 0 : i32
    %c0_i32_0 = arith.constant 0 : i32
    %c0_i32_1 = arith.constant 0 : i32
    return %arg0, %c0_i32, %arg1, %c0_i32_0 : i32, i32, i32, i32
  }
  func.func @transform_5(%arg0: i32, %arg1: i32) -> (i32, i32, i32, i32) {
    %c0_i32 = arith.constant 0 : i32
    %c0_i32_0 = arith.constant 0 : i32
    %c0_i32_1 = arith.constant 0 : i32
    return %arg0, %c0_i32, %arg1, %c0_i32_0 : i32, i32, i32, i32
  }
  func.func @transform_6(%arg0: i32, %arg1: i32) -> (i32, i32, i32, i32) {
    %c0_i32 = arith.constant 0 : i32
    %c0_i32_0 = arith.constant 0 : i32
    %c0_i32_1 = arith.constant 0 : i32
    return %arg0, %c0_i32, %arg1, %c0_i32_0 : i32, i32, i32, i32
  }
}

</mosaic_0001>

<llo_original>
// kernel: tpu_custom_call.1
$region0: #{tpu_custom_call.1}
  #allocation0 [shape = 'u32[]', space=smem, size = 0x4, offset = 0x4, fixed_abs, tag = 'smem constant byte address 0x4 - core index']
  #allocation1 [shape = 'u32[144,128]{1,0:T(1,128)}', space=vmem, size = 0x12000, scoped, tag = 'internal scratch']
  %s0 = inlined_call_operand.hbm [shape: f32[8,128], index: 0, kind: input, shape index: {}]
  %s1 = inlined_call_operand.hbm [shape: f32[8,128], index: 1, kind: output, shape index: {}]
  %s2 = sld [smem:[#allocation0]]
  $region41: #{tpu_custom_call.1} parent=0
    _
  %s4 = ssub.s32 1, %s2
  %s5 = scalar_select 0, %s4, %s2
  $region1: #{tpu_custom_call.1} parent=0
    #allocation2 [shape = 'u8[4096]{0}', space=vmem, size = 0x1000, scoped, tag = 'input window, operand 0, single buffered']
    #allocation3 [shape = 's32[2]{0}', space=sflag, size = 0x8, scoped, tag = 'scoped memory for tpu_custom_call.1']
    #allocation4 [shape = 's32[2]{0}', space=sflag, size = 0x8, scoped, tag = 'scoped memory for tpu_custom_call.1']
    #allocation5 [shape = 'u8[4096]{0}', space=vmem, size = 0x1000, scoped, tag = 'output window, operand 0, single buffered']
    %6 = vsyncpa [#allocation3], 0
    %7 = vsyncpa [#allocation4], 0
    loop: start=0, step=1, limit=4
    $region2: #{tpu_custom_call.1} parent=1 // loop_pre_header
      _
    $region3: #{tpu_custom_call.1} parent=1 // loop_header
      %s9 = sphi 0, %s13
      %p10 = scmp.ge.s32.totalorder %s9, 4
      %s17 = sphi 0, %s17
      %s19 = sphi 0, %s17
      %s20 = sphi 0, %s19
      %s34 = sphi 0, %s20
      %s38 = sphi 0, %s38
      %s40 = sphi 0, %s38
      %s41 = sphi 0, %s40
      %s55 = sphi 0, %s41
    $region4: #{tpu_custom_call.1} parent=1 // loop_header_branch
      %12 = sbr.rel (%p10) target = $region8
    $region5: #{tpu_custom_call.1} parent=1 // loop_body
      %s14 = ssub.s32 %s9, 1
      %s15 = ssub.s32 %s9, 2
      %s16 = sadd.s32 %s9, 1
      %s18 = sadd.s32 %s17, 1
      %p21 = scmp.eq.s32.totalorder %s9, 1
      %p22 = scmp.ne.s32.totalorder %s17, %s19
      %p23 = scmp.eq.s32.totalorder %s9, 0
      %p24 = por %p22, %p23
      %p25 = scmp.ne.s32.totalorder %s17, %s19
      %p26 = scmp.eq.s32.totalorder %s14, 1
      %p27 = por %p25, %p26
      %p28 = scmp.ne.s32.totalorder %s19, %s20
      %p29 = scmp.eq.s32.totalorder %s14, 0
      %p30 = por %p28, %p29
      %p31 = scmp.ne.s32.totalorder %s19, %s20
      %p32 = scmp.eq.s32.totalorder %s15, 1
      %p33 = por %p31, %p32
      %p35 = scmp.ne.s32.totalorder %s20, %s34
      %p36 = scmp.eq.s32.totalorder %s15, 0
      %p37 = por %p35, %p36
      %s39 = sadd.s32 %s38, 1
      %p42 = scmp.eq.s32.totalorder %s9, 1
      %p43 = scmp.ne.s32.totalorder %s38, %s40
      %p44 = scmp.eq.s32.totalorder %s9, 0
      %p45 = por %p43, %p44
      %p46 = scmp.ne.s32.totalorder %s38, %s40
      %p47 = scmp.eq.s32.totalorder %s14, 1
      %p48 = por %p46, %p47
      %p49 = scmp.ne.s32.totalorder %s40, %s41
      %p50 = scmp.eq.s32.totalorder %s14, 0
      %p51 = por %p49, %p50
      %p52 = scmp.ne.s32.totalorder %s40, %s41
      %p53 = scmp.eq.s32.totalorder %s15, 1
      %p54 = por %p52, %p53
      %p56 = scmp.ne.s32.totalorder %s41, %s55
      %p57 = scmp.eq.s32.totalorder %s15, 0
      %p58 = por %p56, %p57
      %p59 = scmp.le.s32.totalorder 1, %s9
      %p60 = scmp.lt.s32.totalorder %s9, 3
      %p61 = pnand %p59, %p60
      %p62 = pneg %p61
      // Predicated region
      $region9: #{tpu_custom_call.1} parent=5 // pred_check
        _
      $region10: #{tpu_custom_call.1} parent=5 // pred_check_branch
        %64 = sbr.rel (%p61) target = $region12
      $region11: #{tpu_custom_call.1} parent=5 // pred_region
        %s65 = ssub.s32 %s9, 1
        // Predicated region
        $region13: #{tpu_custom_call.1} parent=11 // pred_check
          %p66 = pneg %p30
        $region14: #{tpu_custom_call.1} parent=11 // pred_check_branch
          %68 = sbr.rel (%p66) target = $region16
        $region15: #{tpu_custom_call.1} parent=11 // pred_region
          %s70 = ssub.s32 128, 128
          %71 = vsyncadd [#allocation3], %s70
          %s73 = sshll.u32 [#allocation2], 4
          %s74 = int_to_ptr.vmem [resolvable:$true] %s73
          %76 = dma.hbm_to_vmem [thread:$0]  %s0, 128, %s74, [#allocation3]
        $region16: #{tpu_custom_call.1} parent=11 // pred_fallthru
          _
      $region12: #{tpu_custom_call.1} parent=5 // pred_fallthru
        _
      %p77 = scmp.lt.s32.totalorder %s9, 2
      // Predicated region
      $region17: #{tpu_custom_call.1} parent=5 // pred_check
        %p78 = pneg %p77
      $region18: #{tpu_custom_call.1} parent=5 // pred_check_branch
        %80 = sbr.rel (%p78) target = $region20
      $region19: #{tpu_custom_call.1} parent=5 // pred_region
        _
      $region20: #{tpu_custom_call.1} parent=5 // pred_fallthru
        _
      %p81 = scmp.le.s32.totalorder 1, %s9
      %p82 = scmp.lt.s32.totalorder %s9, 3
      %p83 = pnand %p81, %p82
      %p84 = pneg %p83
      // Predicated region
      $region21: #{tpu_custom_call.1} parent=5 // pred_check
        _
      $region22: #{tpu_custom_call.1} parent=5 // pred_check_branch
        %86 = sbr.rel (%p83) target = $region24
      $region23: #{tpu_custom_call.1} parent=5 // pred_region
        %s87 = ssub.s32 %s9, 1
        // Predicated region
        $region25: #{tpu_custom_call.1} parent=23 // pred_check
          %p88 = pneg %p30
        $region26: #{tpu_custom_call.1} parent=23 // pred_check_branch
          %90 = sbr.rel (%p88) target = $region28
        $region27: #{tpu_custom_call.1} parent=23 // pred_region
          %91 = dma.done [#allocation3], 128
        $region28: #{tpu_custom_call.1} parent=23 // pred_fallthru
          _
        %p92 = pneg %p30
        %p93 = pneg %p27
        %p94 = pneg %p51
        %p95 = pneg %p48
        %v96 = vld [vmem:[#allocation2] sm:$0xff]
        %v97 = vadd.f32 %v96, 1.0
        %98 = vst [vmem:[#allocation5] sm:$0xff] %v97
        // Predicated region
        $region29: #{tpu_custom_call.1} parent=23 // pred_check
          %p99 = pneg %p48
        $region30: #{tpu_custom_call.1} parent=23 // pred_check_branch
          %101 = sbr.rel (%p99) target = $region32
        $region31: #{tpu_custom_call.1} parent=23 // pred_region
          %s103 = ssub.s32 128, 128
          %104 = vsyncadd [#allocation4], %s103
          %s106 = sshll.u32 [#allocation5], 4
          %s107 = int_to_ptr.vmem [resolvable:$true] %s106
          %109 = dma.vmem_to_hbm [thread:$0]  %s107, 128, %s1, [#allocation4]
        $region32: #{tpu_custom_call.1} parent=23 // pred_fallthru
          _
        // Predicated region
        $region33: #{tpu_custom_call.1} parent=23 // pred_check
          %p110 = pneg %p48
        $region34: #{tpu_custom_call.1} parent=23 // pred_check_branch
          %112 = sbr.rel (%p110) target = $region36
        $region35: #{tpu_custom_call.1} parent=23 // pred_region
          %113 = dma.done [#allocation4], 128
        $region36: #{tpu_custom_call.1} parent=23 // pred_fallthru
          _
      $region24: #{tpu_custom_call.1} parent=5 // pred_fallthru
        _
      %p114 = scmp.le.s32.totalorder 2, %s9
      // Predicated region
      $region37: #{tpu_custom_call.1} parent=5 // pred_check
        %p115 = pneg %p114
      $region38: #{tpu_custom_call.1} parent=5 // pred_check_branch
        %117 = sbr.rel (%p115) target = $region40
      $region39: #{tpu_custom_call.1} parent=5 // pred_region
        %s118 = ssub.s32 %s9, 2
      $region40: #{tpu_custom_call.1} parent=5 // pred_fallthru
        _
    $region6: #{tpu_custom_call.1} parent=1 // loop_footer
      %s13 = sadd.s32 1, %s9
    $region7: #{tpu_custom_call.1} parent=1 // loop_footer_branch
      %8 = sbr.rel target = $region3
    $region8: #{tpu_custom_call.1} parent=1 // loop_exit
      _
    %119 = vsyncpa [#allocation3], 1
    %s120 = scalar_lea.sflag [#allocation3], 1
    %121 = vsyncpa %s120, 1
    %122 = vsyncpa [#allocation4], 1
    %s123 = scalar_lea.sflag [#allocation4], 1
    %124 = vsyncpa %s123, 1

// kernel: tpu_custom_call.1
$region0: #{tpu_custom_call.1}
  #allocation0 [shape = 'u32[]', space=smem, size = 0x4, offset = 0x4, fixed_abs, tag = 'smem constant byte address 0x4 - core index']
  #allocation1 [shape = 'u32[144,128]{1,0:T(1,128)}', space=vmem, size = 0x12000, scoped, tag = 'internal scratch']
  %s0 = inlined_call_operand.hbm [shape: f32[2,8,32], index: 0, kind: input, shape index: {}]
  %s1 = inlined_call_operand.hbm [shape: bf16[32,32], index: 1, kind: input, shape index: {}]
  %s2 = inlined_call_operand.hbm [shape: bf16[32,32], index: 2, kind: input, shape index: {}]
  %s3 = inlined_call_operand.hbm [shape: bf16[32,32], index: 3, kind: input, shape index: {}]
  %s4 = inlined_call_operand.hbm [shape: bf16[2,4,8,8], index: 4, kind: output, shape index: {0}]
  %s5 = inlined_call_operand.hbm [shape: bf16[2,4,8,8], index: 5, kind: output, shape index: {1}]
  %s6 = inlined_call_operand.hbm [shape: bf16[2,4,8,8], index: 6, kind: output, shape index: {2}]
  %7 = xla_tuple %s4, %s5, %s6
  %s8 = sld [smem:[#allocation0]]
  $region81: #{tpu_custom_call.1} parent=0
    _
  %s10 = ssub.s32 1, %s8
  %s11 = scalar_select 0, %s10, %s8
  $region1: #{tpu_custom_call.1} parent=0
    #allocation2 [shape = 'u8[8192]{0}', space=vmem, size = 0x2000, scoped, tag = 'input window, operand 0']
    #allocation3 [shape = 's32[2]{0}', space=sflag, size = 0x8, scoped, tag = 'scoped memory for tpu_custom_call.1']
    #allocation4 [shape = 's32[2]{0}', space=sflag, size = 0x8, scoped, tag = 'scoped memory for tpu_custom_call.1']
    #allocation5 [shape = 'u8[8192]{0}', space=vmem, size = 0x2000, scoped, tag = 'input window, operand 1, single buffered']
    #allocation6 [shape = 's32[1]{0}', space=sflag, size = 0x4, scoped, tag = 'scoped memory for tpu_custom_call.1']
    #allocation7 [shape = 'u8[8192]{0}', space=vmem, size = 0x2000, scoped, tag = 'input window, operand 2, single buffered']
    #allocation8 [shape = 'u8[8192]{0}', space=vmem, size = 0x2000, scoped, tag = 'input window, operand 3, single buffered']
    #allocation9 [shape = 's32[1]{0}', space=sflag, size = 0x4, scoped, tag = 'scoped memory for tpu_custom_call.1']
    #allocation10 [shape = 'u8[16384]{0}', space=vmem, size = 0x4000, scoped, tag = 'output window, operand 0']
    #allocation11 [shape = 'u8[16384]{0}', space=vmem, size = 0x4000, scoped, tag = 'output window, operand 1']
    #allocation12 [shape = 's32[2]{0}', space=sflag, size = 0x8, scoped, tag = 'scoped memory for tpu_custom_call.1']
    #allocation13 [shape = 'u8[16384]{0}', space=vmem, size = 0x4000, scoped, tag = 'output window, operand 2']
    %12 = vsyncpa [#allocation3], 0
    %s13 = scalar_lea.sflag [#allocation3], 1
    %14 = vsyncpa %s13, 0
    %15 = vsyncpa [#allocation6], 0
    %16 = vsyncpa [#allocation9], 0
    %17 = vsyncpa [#allocation4], 0
    %s18 = scalar_lea.sflag [#allocation4], 1
    %19 = vsyncpa %s18, 0
    %20 = vsyncpa [#allocation12], 0
    %s21 = scalar_lea.sflag [#allocation12], 1
    %22 = vsyncpa %s21, 0
    loop: start=0, step=1, limit=4
    $region2: #{tpu_custom_call.1} parent=1 // loop_pre_header
      _
    $region3: #{tpu_custom_call.1} parent=1 // loop_header
      %s24 = sphi 0, %s28
      %p25 = scmp.ge.s32.totalorder %s24, 4
      %s31 = sphi 0, %s43
      %s32 = sphi 0, %s39
      %s33 = sphi 0, %s31
      %s34 = sphi 0, %s32
      %s35 = sphi 0, %s33
      %s36 = sphi 0, %s34
      %s48 = sphi 0, %s50
      %s51 = sphi 0, %s48
      %s52 = sphi 0, %s51
      %s68 = sphi 0, %s52
      %s72 = sphi 0, %s72
      %s74 = sphi 0, %s72
      %s75 = sphi 0, %s74
      %s89 = sphi 0, %s75
      %s93 = sphi 0, %s93
      %s95 = sphi 0, %s93
      %s96 = sphi 0, %s95
      %s110 = sphi 0, %s96
      %s114 = sphi 0, %s114
      %s116 = sphi 0, %s114
      %s117 = sphi 0, %s116
      %s131 = sphi 0, %s117
      %s139 = sphi 0, %s141
      %s142 = sphi 0, %s139
      %s143 = sphi 0, %s142
      %s159 = sphi 0, %s143
      %s167 = sphi 0, %s169
      %s170 = sphi 0, %s167
      %s171 = sphi 0, %s170
      %s187 = sphi 0, %s171
      %s195 = sphi 0, %s197
      %s198 = sphi 0, %s195
      %s199 = sphi 0, %s198
      %s215 = sphi 0, %s199
    $region4: #{tpu_custom_call.1} parent=1 // loop_header_branch
      %27 = sbr.rel (%p25) target = $region8
    $region5: #{tpu_custom_call.1} parent=1 // loop_body
      %s29 = ssub.s32 %s24, 1
      %s30 = ssub.s32 %s24, 2
      %s37 = sadd.s32 1, %s32
      %p38 = scmp.ge.s32.totalorder %s37, 1
      %s39 = scalar_select %p38, 0, %s37
      %s40 = sadd.s32 1, %s31
      %s41 = scalar_select %p38, %s40, %s31
      %p42 = scmp.ge.s32.totalorder %s41, 2
      %s43 = scalar_select %p42, 0, %s41
      %s44 = ssub.s32 %s31, %s43
      %s45 = ssub.s32 %s32, %s39
      %s46 = sor.u32 %s44, %s45
      %p47 = scmp.eq.s32.totalorder %s46, 0
      %s49 = sadd.s32 %s48, 1
      %s50 = scalar_select %p47, %s48, %s49
      %p53 = pneg %p47
      %p54 = scmp.eq.s32.totalorder %s24, 1
      %p55 = por %p53, %p54
      %p56 = scmp.ne.s32.totalorder %s48, %s51
      %p57 = scmp.eq.s32.totalorder %s24, 0
      %p58 = por %p56, %p57
      %p59 = scmp.ne.s32.totalorder %s48, %s51
      %p60 = scmp.eq.s32.totalorder %s29, 1
      %p61 = por %p59, %p60
      %p62 = scmp.ne.s32.totalorder %s51, %s52
      %p63 = scmp.eq.s32.totalorder %s29, 0
      %p64 = por %p62, %p63
      %p65 = scmp.ne.s32.totalorder %s51, %s52
      %p66 = scmp.eq.s32.totalorder %s30, 1
      %p67 = por %p65, %p66
      %p69 = scmp.ne.s32.totalorder %s52, %s68
      %p70 = scmp.eq.s32.totalorder %s30, 0
      %p71 = por %p69, %p70
      %s73 = sadd.s32 %s72, 1
      %p76 = scmp.eq.s32.totalorder %s24, 1
      %p77 = scmp.ne.s32.totalorder %s72, %s74
      %p78 = scmp.eq.s32.totalorder %s24, 0
      %p79 = por %p77, %p78
      %p80 = scmp.ne.s32.totalorder %s72, %s74
      %p81 = scmp.eq.s32.totalorder %s29, 1
      %p82 = por %p80, %p81
      %p83 = scmp.ne.s32.totalorder %s74, %s75
      %p84 = scmp.eq.s32.totalorder %s29, 0
      %p85 = por %p83, %p84
      %p86 = scmp.ne.s32.totalorder %s74, %s75
      %p87 = scmp.eq.s32.totalorder %s30, 1
      %p88 = por %p86, %p87
      %p90 = scmp.ne.s32.totalorder %s75, %s89
      %p91 = scmp.eq.s32.totalorder %s30, 0
      %p92 = por %p90, %p91
      %s94 = sadd.s32 %s93, 1
      %p97 = scmp.eq.s32.totalorder %s24, 1
      %p98 = scmp.ne.s32.totalorder %s93, %s95
      %p99 = scmp.eq.s32.totalorder %s24, 0
      %p100 = por %p98, %p99
      %p101 = scmp.ne.s32.totalorder %s93, %s95
      %p102 = scmp.eq.s32.totalorder %s29, 1
      %p103 = por %p101, %p102
      %p104 = scmp.ne.s32.totalorder %s95, %s96
      %p105 = scmp.eq.s32.totalorder %s29, 0
      %p106 = por %p104, %p105
      %p107 = scmp.ne.s32.totalorder %s95, %s96
      %p108 = scmp.eq.s32.totalorder %s30, 1
      %p109 = por %p107, %p108
      %p111 = scmp.ne.s32.totalorder %s96, %s110
      %p112 = scmp.eq.s32.totalorder %s30, 0
      %p113 = por %p111, %p112
      %s115 = sadd.s32 %s114, 1
      %p118 = scmp.eq.s32.totalorder %s24, 1
      %p119 = scmp.ne.s32.totalorder %s114, %s116
      %p120 = scmp.eq.s32.totalorder %s24, 0
      %p121 = por %p119, %p120
      %p122 = scmp.ne.s32.totalorder %s114, %s116
      %p123 = scmp.eq.s32.totalorder %s29, 1
      %p124 = por %p122, %p123
      %p125 = scmp.ne.s32.totalorder %s116, %s117
      %p126 = scmp.eq.s32.totalorder %s29, 0
      %p127 = por %p125, %p126
      %p128 = scmp.ne.s32.totalorder %s116, %s117
      %p129 = scmp.eq.s32.totalorder %s30, 1
      %p130 = por %p128, %p129
      %p132 = scmp.ne.s32.totalorder %s117, %s131
      %p133 = scmp.eq.s32.totalorder %s30, 0
      %p134 = por %p132, %p133
      %s135 = ssub.s32 %s31, %s43
      %s136 = ssub.s32 %s32, %s39
      %s137 = sor.u32 %s135, %s136
      %p138 = scmp.eq.s32.totalorder %s137, 0
      %s140 = sadd.s32 %s139, 1
      %s141 = scalar_select %p138, %s139, %s140
      %p144 = pneg %p138
      %p145 = scmp.eq.s32.totalorder %s24, 1
      %p146 = por %p144, %p145
      %p147 = scmp.ne.s32.totalorder %s139, %s142
      %p148 = scmp.eq.s32.totalorder %s24, 0
      %p149 = por %p147, %p148
      %p150 = scmp.ne.s32.totalorder %s139, %s142
      %p151 = scmp.eq.s32.totalorder %s29, 1
      %p152 = por %p150, %p151
      %p153 = scmp.ne.s32.totalorder %s142, %s143
      %p154 = scmp.eq.s32.totalorder %s29, 0
      %p155 = por %p153, %p154
      %p156 = scmp.ne.s32.totalorder %s142, %s143
      %p157 = scmp.eq.s32.totalorder %s30, 1
      %p158 = por %p156, %p157
      %p160 = scmp.ne.s32.totalorder %s143, %s159
      %p161 = scmp.eq.s32.totalorder %s30, 0
      %p162 = por %p160, %p161
      %s163 = ssub.s32 %s31, %s43
      %s164 = ssub.s32 %s32, %s39
      %s165 = sor.u32 %s163, %s164
      %p166 = scmp.eq.s32.totalorder %s165, 0
      %s168 = sadd.s32 %s167, 1
      %s169 = scalar_select %p166, %s167, %s168
      %p172 = pneg %p166
      %p173 = scmp.eq.s32.totalorder %s24, 1
      %p174 = por %p172, %p173
      %p175 = scmp.ne.s32.totalorder %s167, %s170
      %p176 = scmp.eq.s32.totalorder %s24, 0
      %p177 = por %p175, %p176
      %p178 = scmp.ne.s32.totalorder %s167, %s170
      %p179 = scmp.eq.s32.totalorder %s29, 1
      %p180 = por %p178, %p179
      %p181 = scmp.ne.s32.totalorder %s170, %s171
      %p182 = scmp.eq.s32.totalorder %s29, 0
      %p183 = por %p181, %p182
      %p184 = scmp.ne.s32.totalorder %s170, %s171
      %p185 = scmp.eq.s32.totalorder %s30, 1
      %p186 = por %p184, %p185
      %p188 = scmp.ne.s32.totalorder %s171, %s187
      %p189 = scmp.eq.s32.totalorder %s30, 0
      %p190 = por %p188, %p189
      %s191 = ssub.s32 %s31, %s43
      %s192 = ssub.s32 %s32, %s39
      %s193 = sor.u32 %s191, %s192
      %p194 = scmp.eq.s32.totalorder %s193, 0
      %s196 = sadd.s32 %s195, 1
      %s197 = scalar_select %p194, %s195, %s196
      %p200 = pneg %p194
      %p201 = scmp.eq.s32.totalorder %s24, 1
      %p202 = por %p200, %p201
      %p203 = scmp.ne.s32.totalorder %s195, %s198
      %p204 = scmp.eq.s32.totalorder %s24, 0
      %p205 = por %p203, %p204
      %p206 = scmp.ne.s32.totalorder %s195, %s198
      %p207 = scmp.eq.s32.totalorder %s29, 1
      %p208 = por %p206, %p207
      %p209 = scmp.ne.s32.totalorder %s198, %s199
      %p210 = scmp.eq.s32.totalorder %s29, 0
      %p211 = por %p209, %p210
      %p212 = scmp.ne.s32.totalorder %s198, %s199
      %p213 = scmp.eq.s32.totalorder %s30, 1
      %p214 = por %p212, %p213
      %p216 = scmp.ne.s32.totalorder %s199, %s215
      %p217 = scmp.eq.s32.totalorder %s30, 0
      %p218 = por %p216, %p217
      %p219 = scmp.le.s32.totalorder 1, %s24
      %p220 = scmp.lt.s32.totalorder %s24, 3
      %p221 = pnand %p219, %p220
      %p222 = pneg %p221
      // Predicated region
      $region9: #{tpu_custom_call.1} parent=5 // pred_check
        _
      $region10: #{tpu_custom_call.1} parent=5 // pred_check_branch
        %224 = sbr.rel (%p221) target = $region12
      $region11: #{tpu_custom_call.1} parent=5 // pred_region
        %s225 = ssub.s32 %s24, 1
        // Predicated region
        $region13: #{tpu_custom_call.1} parent=11 // pred_check
          %p226 = pneg %p85
        $region14: #{tpu_custom_call.1} parent=11 // pred_check_branch
          %228 = sbr.rel (%p226) target = $region16
        $region15: #{tpu_custom_call.1} parent=11 // pred_region
          %s230 = ssub.s32 256, 256
          %231 = vsyncadd [#allocation6], %s230
          %s232 = sshll.u32 [#allocation5], 4
          %s233 = int_to_ptr.vmem [resolvable:$true] %s232
          %238 = dma.hbm_to_vmem [thread:$0]  %s1, 256, %s233, [#allocation6], 64, 64, 4
        $region16: #{tpu_custom_call.1} parent=11 // pred_fallthru
          _
        // Predicated region
        $region17: #{tpu_custom_call.1} parent=11 // pred_check
          %p239 = pneg %p106
        $region18: #{tpu_custom_call.1} parent=11 // pred_check_branch
          %241 = sbr.rel (%p239) target = $region20
        $region19: #{tpu_custom_call.1} parent=11 // pred_region
          %s243 = ssub.s32 256, 256
          %244 = vsyncadd [#allocation6], %s243
          %s245 = sshll.u32 [#allocation7], 4
          %s246 = int_to_ptr.vmem [resolvable:$true] %s245
          %251 = dma.hbm_to_vmem [thread:$0]  %s2, 256, %s246, [#allocation6], 64, 64, 4
        $region20: #{tpu_custom_call.1} parent=11 // pred_fallthru
          _
        // Predicated region
        $region21: #{tpu_custom_call.1} parent=11 // pred_check
          %p252 = pneg %p127
        $region22: #{tpu_custom_call.1} parent=11 // pred_check_branch
          %254 = sbr.rel (%p252) target = $region24
        $region23: #{tpu_custom_call.1} parent=11 // pred_region
          %s256 = ssub.s32 256, 256
          %257 = vsyncadd [#allocation9], %s256
          %s258 = sshll.u32 [#allocation8], 4
          %s259 = int_to_ptr.vmem [resolvable:$true] %s258
          %264 = dma.hbm_to_vmem [thread:$0]  %s3, 256, %s259, [#allocation9], 64, 64, 4
        $region24: #{tpu_custom_call.1} parent=11 // pred_fallthru
          _
      $region12: #{tpu_custom_call.1} parent=5 // pred_fallthru
        _
      %p265 = scmp.lt.s32.totalorder %s24, 2
      // Predicated region
      $region25: #{tpu_custom_call.1} parent=5 // pred_check
        %p266 = pneg %p265
      $region26: #{tpu_custom_call.1} parent=5 // pred_check_branch
        %268 = sbr.rel (%p266) target = $region28
      $region27: #{tpu_custom_call.1} parent=5 // pred_region
        // Predicated region
        $region29: #{tpu_custom_call.1} parent=27 // pred_check
          %p269 = pneg %p58
        $region30: #{tpu_custom_call.1} parent=27 // pred_check_branch
          %271 = sbr.rel (%p269) target = $region32
        $region31: #{tpu_custom_call.1} parent=27 // pred_region
          %s272 = sand.u32 %s48, 1
          %s273 = scalar_lea.sflag [#allocation3], %s272
          %s274 = sand.u32 %s48, 1
          %s275 = smul.addr %s274, 8
          %s276 = scalar_lea.vmem [#allocation2], %s275
          %s278 = ssub.s32 128, 128
          %279 = vsyncadd %s273, %s278
          %s280 = sadd.s32 %s32, %s31
          %s281 = smul.addr %s280, 128
          %s282 = scalar_lea.hbm %s0, %s281
          %s284 = sshll.u32 %s276, 4
          %s285 = int_to_ptr.vmem [resolvable:$true] %s284
          %287 = dma.hbm_to_vmem [thread:$0]  %s282, 128, %s285, %s273
        $region32: #{tpu_custom_call.1} parent=27 // pred_fallthru
          _
      $region28: #{tpu_custom_call.1} parent=5 // pred_fallthru
        _
      %p288 = scmp.le.s32.totalorder 1, %s24
      %p289 = scmp.lt.s32.totalorder %s24, 3
      %p290 = pnand %p288, %p289
      %p291 = pneg %p290
      // Predicated region
      $region33: #{tpu_custom_call.1} parent=5 // pred_check
        _
      $region34: #{tpu_custom_call.1} parent=5 // pred_check_branch
        %293 = sbr.rel (%p290) target = $region36
      $region35: #{tpu_custom_call.1} parent=5 // pred_region
        %s294 = ssub.s32 %s24, 1
        %s295 = sand.u32 %s51, 1
        %s296 = scalar_lea.sflag [#allocation3], %s295
        %s297 = sand.u32 %s51, 1
        %s298 = smul.addr %s297, 8
        %s299 = scalar_lea.vmem [#allocation2], %s298
        // Predicated region
        $region37: #{tpu_custom_call.1} parent=35 // pred_check
          %p300 = pneg %p64
        $region38: #{tpu_custom_call.1} parent=35 // pred_check_branch
          %302 = sbr.rel (%p300) target = $region40
        $region39: #{tpu_custom_call.1} parent=35 // pred_region
          %303 = dma.done %s296, 128
        $region40: #{tpu_custom_call.1} parent=35 // pred_fallthru
          _
        // Predicated region
        $region41: #{tpu_custom_call.1} parent=35 // pred_check
          %p304 = pneg %p85
        $region42: #{tpu_custom_call.1} parent=35 // pred_check_branch
          %306 = sbr.rel (%p304) target = $region44
        $region43: #{tpu_custom_call.1} parent=35 // pred_region
          %307 = dma.done [#allocation6], 256
        $region44: #{tpu_custom_call.1} parent=35 // pred_fallthru
          _
        // Predicated region
        $region45: #{tpu_custom_call.1} parent=35 // pred_check
          %p308 = pneg %p106
        $region46: #{tpu_custom_call.1} parent=35 // pred_check_branch
          %310 = sbr.rel (%p308) target = $region48
        $region47: #{tpu_custom_call.1} parent=35 // pred_region
          %311 = dma.done [#allocation6], 256
        $region48: #{tpu_custom_call.1} parent=35 // pred_fallthru
          _
        // Predicated region
        $region49: #{tpu_custom_call.1} parent=35 // pred_check
          %p312 = pneg %p127
        $region50: #{tpu_custom_call.1} parent=35 // pred_check_branch
          %314 = sbr.rel (%p312) target = $region52
        $region51: #{tpu_custom_call.1} parent=35 // pred_region
          %315 = dma.done [#allocation9], 256
        $region52: #{tpu_custom_call.1} parent=35 // pred_fallthru
          _
        %s316 = sand.u32 %s51, 1
        %s317 = scalar_lea.sflag [#allocation3], %s316
        %s318 = sand.u32 %s51, 1
        %s319 = smul.addr %s318, 8
        %s320 = scalar_lea.vmem [#allocation2], %s319
        %p321 = pneg %p64
        %p322 = pneg %p61
        %p323 = pneg %p85
        %p324 = pneg %p82
        %p325 = pneg %p106
        %p326 = pneg %p103
        %p327 = pneg %p127
        %p328 = pneg %p124
        %p329 = pneg %p155
        %p330 = pneg %p152
        %s331 = sand.u32 %s142, 1
        %s332 = scalar_lea.sflag [#allocation4], %s331
        %s333 = sand.u32 %s142, 1
        %s334 = smul.addr %s333, 16
        %s335 = scalar_lea.vmem [#allocation10], %s334
        %p336 = pneg %p183
        %p337 = pneg %p180
        %s338 = sand.u32 %s29, 1
        %s339 = scalar_lea.sflag [#allocation12], %s338
        %s340 = sand.u32 %s170, 1
        %s341 = smul.addr %s340, 16
        %s342 = scalar_lea.vmem [#allocation11], %s341
        %p343 = pneg %p211
        %p344 = pneg %p208
        %s345 = sand.u32 %s29, 1
        %s346 = scalar_lea.sflag [#allocation12], %s345
        %s347 = sand.u32 %s198, 1
        %s348 = smul.addr %s347, 16
        %s349 = scalar_lea.vmem [#allocation13], %s348
        %v351 = vld [vmem:[%s299] sm:$0xff]
        %v352 = vpack.c.bf16 %v351, %v351
        %v353 = vld [vmem:[#allocation5] sm:$0xf]
        %v354 = vld [vmem:[#allocation5 + $0x4] sm:$0xf]
        %v355 = vld [vmem:[#allocation5 + $0x8] sm:$0xf]
        %v356 = vld [vmem:[#allocation5 + $0xc] sm:$0xf]
        %v361 = vunpack.c.l.b16 %v353
        %v362 = vunpack.c.l.b16 %v354
        %v363 = vunpack.c.l.b16 %v355
        %v364 = vunpack.c.l.b16 %v356
        %v365 = vpack.c.b16 %v362, %v361
        %v366 = vpack.c.b16 %v364, %v363
        %vm369 = vcmask 261120
        %v371 = vsel %vm369, %v352, 0
        %373 = vmatprep.subr.bf16.mxu0 0
        %374 = vmatpush1.bf16.msra.mxu0 0
        %375 = vmatprep.subr.bf16.mxu0 0
        %376 = vmatpush1.bf16.msra.mxu0 0
        %377 = vmatprep.subr.bf16.mxu0 0
        %378 = vmatpush1.bf16.msra.mxu0 0
        %379 = vmatprep.subr.bf16.mxu0 0
        %380 = vmatpush1.bf16.msra.mxu0 0
        %381 = vmatprep.subr.bf16.mxu0 0
        %382 = vmatpush1.bf16.msra.mxu0 0
        %383 = vmatprep.subr.bf16.mxu0 0
        %384 = vmatpush1.bf16.msra.mxu0 0
        %385 = vmatprep.subr.bf16.mxu0 0
        %386 = vmatpush1.bf16.msra.mxu0 %v366
        %387 = vmatprep.subr.bf16.mxu0 0
        %388 = vmatpush1.bf16.msra.mxu0 %v365
        %389 = vmatprep.subr.bf16.mxu0 0
        %390 = vmatpush2.bf16.msra.mxu0 0
        %391 = vmatprep.subr.bf16.mxu0 0
        %392 = vmatpush2.bf16.msra.mxu0 0
        %393 = vmatprep.subr.bf16.mxu0 0
        %394 = vmatpush2.bf16.msra.mxu0 0
        %395 = vmatprep.subr.bf16.mxu0 0
        %396 = vmatpush2.bf16.msra.mxu0 0
        %397 = vmatprep.subr.bf16.mxu0 0
        %398 = vmatpush2.bf16.msra.mxu0 0
        %399 = vmatprep.subr.bf16.mxu0 0
        %400 = vmatpush2.bf16.msra.mxu0 0
        %401 = vmatprep.subr.bf16.mxu0 0
        %402 = vmatpush2.bf16.msra.mxu0 0
        %403 = vmatprep.subr.bf16.mxu0 0
        %404 = vmatpush2.bf16.msra.mxu0 0
        %405 = vmatprep.mubr.bf16.mxu0 0
        %406 = vmatmul.mubr.bf16.gmra.mxu0 %v371
        %v407 = vpop.f32.mrf.mxu0
        %v408 = vadd.f32 0.0, %v407
        %v409 = vpop.f32.mrf.mxu0
        %v410 = vpop.f32.mrf.mxu0
        %v411 = vpop.f32.mrf.mxu0
        %412 = vdwg.mxu0
        %414 = vrot.lane.b32.xlu0 %v408, 120
        %v415 = vpop.permute.xlu0 %414
        %417 = vrot.lane.b32.xlu0 %v408, 112
        %v418 = vpop.permute.xlu0 %417
        %420 = vrot.lane.b32.xlu0 %v408, 104
        %v421 = vpop.permute.xlu0 %420
        %v423 = vcombine.low %v408, %v418
        %v424 = vcombine.high %v408, %v418
        %v426 = vunpack.c.l.s4 1983009808
        %v427 = vunpack.c.0.s8 %v426
        %v428 = vlaneseq
        %v429 = vshrl.u32 %v428, 7
        %v430 = vsub.s32 %v427, %v429
        %v431 = vrot.slane %v423, %v430
        %v433 = vunpack.c.l.s4 1983009808
        %v434 = vunpack.c.0.s8 %v433
        %v435 = vlaneseq
        %v436 = vshrl.u32 %v435, 7
        %v437 = vsub.s32 %v434, %v436
        %v438 = vrot.slane %v424, %v437
        %v439 = vcombine.low %v415, %v421
        %v440 = vcombine.high %v415, %v421
        %v442 = vunpack.c.l.s4 1983009808
        %v443 = vunpack.c.0.s8 %v442
        %v444 = vlaneseq
        %v445 = vshrl.u32 %v444, 7
        %v446 = vsub.s32 %v443, %v445
        %v447 = vrot.slane %v439, %v446
        %v449 = vunpack.c.l.s4 1983009808
        %v450 = vunpack.c.0.s8 %v449
        %v451 = vlaneseq
        %v452 = vshrl.u32 %v451, 7
        %v453 = vsub.s32 %v450, %v452
        %v454 = vrot.slane %v440, %v453
        %v455 = vcombine.low %v431, %v447
        %v456 = vcombine.high %v431, %v447
        %v458 = vunpack.c.l.s4 1934713408
        %v459 = vunpack.c.0.s8 %v458
        %v460 = vlaneseq
        %v461 = vshrl.u32 %v460, 7
        %v462 = vsub.s32 %v459, %v461
        %v463 = vrot.slane %v455, %v462
        %v465 = vunpack.c.l.s4 1934713408
        %v466 = vunpack.c.0.s8 %v465
        %v467 = vlaneseq
        %v468 = vshrl.u32 %v467, 7
        %v469 = vsub.s32 %v466, %v468
        %v470 = vrot.slane %v456, %v469
        %v471 = vcombine.low %v438, %v454
        %v472 = vcombine.high %v438, %v454
        %v474 = vunpack.c.l.s4 1934713408
        %v475 = vunpack.c.0.s8 %v474
        %v476 = vlaneseq
        %v477 = vshrl.u32 %v476, 7
        %v478 = vsub.s32 %v475, %v477
        %v479 = vrot.slane %v471, %v478
        %v481 = vunpack.c.l.s4 1934713408
        %v482 = vunpack.c.0.s8 %v481
        %v483 = vlaneseq
        %v484 = vshrl.u32 %v483, 7
        %v485 = vsub.s32 %v482, %v484
        %v486 = vrot.slane %v472, %v485
        %v487 = vcombine.high %v463, 0.0
        %v488 = vcombine.high %v470, 0.0
        %v489 = vcombine.high %v479, 0.0
        %v490 = vcombine.high %v486, 0.0
        %v491 = vcombine.low %v463, %v470
        %v493 = vunpack.c.l.s4 1983009808
        %v494 = vunpack.c.0.s8 %v493
        %v495 = vlaneseq
        %v496 = vshrl.u32 %v495, 7
        %v497 = vsub.s32 %v494, %v496
        %v498 = vrot.slane %v491, %v497
        %v499 = vcombine.low %v487, %v488
        %v501 = vunpack.c.l.s4 1983009808
        %v502 = vunpack.c.0.s8 %v501
        %v503 = vlaneseq
        %v504 = vshrl.u32 %v503, 7
        %v505 = vsub.s32 %v502, %v504
        %v506 = vrot.slane %v499, %v505
        %v507 = vcombine.low %v479, %v486
        %v509 = vunpack.c.l.s4 1983009808
        %v510 = vunpack.c.0.s8 %v509
        %v511 = vlaneseq
        %v512 = vshrl.u32 %v511, 7
        %v513 = vsub.s32 %v510, %v512
        %v514 = vrot.slane %v507, %v513
        %v515 = vcombine.low %v489, %v490
        %v517 = vunpack.c.l.s4 1983009808
        %v518 = vunpack.c.0.s8 %v517
        %v519 = vlaneseq
        %v520 = vshrl.u32 %v519, 7
        %v521 = vsub.s32 %v518, %v520
        %v522 = vrot.slane %v515, %v521
        %v523 = vcombine.low %v498, %v506
        %v524 = vcombine.high %v498, %v506
        %v526 = vunpack.c.l.s4 1934713408
        %v527 = vunpack.c.0.s8 %v526
        %v528 = vlaneseq
        %v529 = vshrl.u32 %v528, 7
        %v530 = vsub.s32 %v527, %v529
        %v531 = vrot.slane %v523, %v530
        %v533 = vunpack.c.l.s4 1934713408
        %v534 = vunpack.c.0.s8 %v533
        %v535 = vlaneseq
        %v536 = vshrl.u32 %v535, 7
        %v537 = vsub.s32 %v534, %v536
        %v538 = vrot.slane %v524, %v537
        %v539 = vcombine.low %v514, %v522
        %v540 = vcombine.high %v514, %v522
        %v542 = vunpack.c.l.s4 1934713408
        %v543 = vunpack.c.0.s8 %v542
        %v544 = vlaneseq
        %v545 = vshrl.u32 %v544, 7
        %v546 = vsub.s32 %v543, %v545
        %v547 = vrot.slane %v539, %v546
        %v549 = vunpack.c.l.s4 1934713408
        %v550 = vunpack.c.0.s8 %v549
        %v551 = vlaneseq
        %v552 = vshrl.u32 %v551, 7
        %v553 = vsub.s32 %v550, %v552
        %v554 = vrot.slane %v540, %v553
        %v555 = vcombine.low %v531, %v547
        %v556 = vcombine.high %v531, %v547
        %v557 = vcombine.low %v538, %v554
        %v558 = vcombine.high %v538, %v554
        %v559 = vpack.c.bf16 %v555, %v555
        %v560 = vpack.c.bf16 %v556, %v556
        %v561 = vpack.c.bf16 %v557, %v557
        %v562 = vpack.c.bf16 %v558, %v558
        %vm563 = vcmask 60416
        %564 = vst.msk [vmem:[%s335] sm:$0xf] %vm563, %v559
        %565 = vst.msk [vmem:[%s335 + $0x4] sm:$0xf] %vm563, %v560
        %566 = vst.msk [vmem:[%s335 + $0x8] sm:$0xf] %vm563, %v561
        %567 = vst.msk [vmem:[%s335 + $0xc] sm:$0xf] %vm563, %v562
        %v568 = vld [vmem:[#allocation7] sm:$0xf]
        %v569 = vld [vmem:[#allocation7 + $0x4] sm:$0xf]
        %v570 = vld [vmem:[#allocation7 + $0x8] sm:$0xf]
        %v571 = vld [vmem:[#allocation7 + $0xc] sm:$0xf]
        %v576 = vunpack.c.l.b16 %v568
        %v577 = vunpack.c.l.b16 %v569
        %v578 = vunpack.c.l.b16 %v570
        %v579 = vunpack.c.l.b16 %v571
        %v580 = vpack.c.b16 %v577, %v576
        %v581 = vpack.c.b16 %v579, %v578
        %584 = vmatprep.subr.bf16.mxu0 0
        %585 = vmatpush1.bf16.msra.mxu0 0
        %586 = vmatprep.subr.bf16.mxu0 0
        %587 = vmatpush1.bf16.msra.mxu0 0
        %588 = vmatprep.subr.bf16.mxu0 0
        %589 = vmatpush1.bf16.msra.mxu0 0
        %590 = vmatprep.subr.bf16.mxu0 0
        %591 = vmatpush1.bf16.msra.mxu0 0
        %592 = vmatprep.subr.bf16.mxu0 0
        %593 = vmatpush1.bf16.msra.mxu0 0
        %594 = vmatprep.subr.bf16.mxu0 0
        %595 = vmatpush1.bf16.msra.mxu0 0
        %596 = vmatprep.subr.bf16.mxu0 0
        %597 = vmatpush1.bf16.msra.mxu0 %v581
        %598 = vmatprep.subr.bf16.mxu0 0
        %599 = vmatpush1.bf16.msra.mxu0 %v580
        %600 = vmatprep.subr.bf16.mxu0 0
        %601 = vmatpush2.bf16.msra.mxu0 0
        %602 = vmatprep.subr.bf16.mxu0 0
        %603 = vmatpush2.bf16.msra.mxu0 0
        %604 = vmatprep.subr.bf16.mxu0 0
        %605 = vmatpush2.bf16.msra.mxu0 0
        %606 = vmatprep.subr.bf16.mxu0 0
        %607 = vmatpush2.bf16.msra.mxu0 0
        %608 = vmatprep.subr.bf16.mxu0 0
        %609 = vmatpush2.bf16.msra.mxu0 0
        %610 = vmatprep.subr.bf16.mxu0 0
        %611 = vmatpush2.bf16.msra.mxu0 0
        %612 = vmatprep.subr.bf16.mxu0 0
        %613 = vmatpush2.bf16.msra.mxu0 0
        %614 = vmatprep.subr.bf16.mxu0 0
        %615 = vmatpush2.bf16.msra.mxu0 0
        %616 = vmatprep.mubr.bf16.mxu0 0
        %617 = vmatmul.mubr.bf16.gmra.mxu0 %v371
        %v618 = vpop.f32.mrf.mxu0
        %v619 = vadd.f32 0.0, %v618
        %v620 = vpop.f32.mrf.mxu0
        %v621 = vpop.f32.mrf.mxu0
        %v622 = vpop.f32.mrf.mxu0
        %623 = vdwg.mxu0
        %625 = vrot.lane.b32.xlu0 %v619, 120
        %v626 = vpop.permute.xlu0 %625
        %628 = vrot.lane.b32.xlu0 %v619, 112
        %v629 = vpop.permute.xlu0 %628
        %631 = vrot.lane.b32.xlu0 %v619, 104
        %v632 = vpop.permute.xlu0 %631
        %v634 = vcombine.low %v619, %v629
        %v635 = vcombine.high %v619, %v629
        %v637 = vunpack.c.l.s4 1983009808
        %v638 = vunpack.c.0.s8 %v637
        %v639 = vlaneseq
        %v640 = vshrl.u32 %v639, 7
        %v641 = vsub.s32 %v638, %v640
        %v642 = vrot.slane %v634, %v641
        %v644 = vunpack.c.l.s4 1983009808
        %v645 = vunpack.c.0.s8 %v644
        %v646 = vlaneseq
        %v647 = vshrl.u32 %v646, 7
        %v648 = vsub.s32 %v645, %v647
        %v649 = vrot.slane %v635, %v648
        %v650 = vcombine.low %v626, %v632
        %v651 = vcombine.high %v626, %v632
        %v653 = vunpack.c.l.s4 1983009808
        %v654 = vunpack.c.0.s8 %v653
        %v655 = vlaneseq
        %v656 = vshrl.u32 %v655, 7
        %v657 = vsub.s32 %v654, %v656
        %v658 = vrot.slane %v650, %v657
        %v660 = vunpack.c.l.s4 1983009808
        %v661 = vunpack.c.0.s8 %v660
        %v662 = vlaneseq
        %v663 = vshrl.u32 %v662, 7
        %v664 = vsub.s32 %v661, %v663
        %v665 = vrot.slane %v651, %v664
        %v666 = vcombine.low %v642, %v658
        %v667 = vcombine.high %v642, %v658
        %v669 = vunpack.c.l.s4 1934713408
        %v670 = vunpack.c.0.s8 %v669
        %v671 = vlaneseq
        %v672 = vshrl.u32 %v671, 7
        %v673 = vsub.s32 %v670, %v672
        %v674 = vrot.slane %v666, %v673
        %v676 = vunpack.c.l.s4 1934713408
        %v677 = vunpack.c.0.s8 %v676
        %v678 = vlaneseq
        %v679 = vshrl.u32 %v678, 7
        %v680 = vsub.s32 %v677, %v679
        %v681 = vrot.slane %v667, %v680
        %v682 = vcombine.low %v649, %v665
        %v683 = vcombine.high %v649, %v665
        %v685 = vunpack.c.l.s4 1934713408
        %v686 = vunpack.c.0.s8 %v685
        %v687 = vlaneseq
        %v688 = vshrl.u32 %v687, 7
        %v689 = vsub.s32 %v686, %v688
        %v690 = vrot.slane %v682, %v689
        %v692 = vunpack.c.l.s4 1934713408
        %v693 = vunpack.c.0.s8 %v692
        %v694 = vlaneseq
        %v695 = vshrl.u32 %v694, 7
        %v696 = vsub.s32 %v693, %v695
        %v697 = vrot.slane %v683, %v696
        %v698 = vcombine.high %v674, 0.0
        %v699 = vcombine.high %v681, 0.0
        %v700 = vcombine.high %v690, 0.0
        %v701 = vcombine.high %v697, 0.0
        %v702 = vcombine.low %v674, %v681
        %v704 = vunpack.c.l.s4 1983009808
        %v705 = vunpack.c.0.s8 %v704
        %v706 = vlaneseq
        %v707 = vshrl.u32 %v706, 7
        %v708 = vsub.s32 %v705, %v707
        %v709 = vrot.slane %v702, %v708
        %v710 = vcombine.low %v698, %v699
        %v712 = vunpack.c.l.s4 1983009808
        %v713 = vunpack.c.0.s8 %v712
        %v714 = vlaneseq
        %v715 = vshrl.u32 %v714, 7
        %v716 = vsub.s32 %v713, %v715
        %v717 = vrot.slane %v710, %v716
        %v718 = vcombine.low %v690, %v697
        %v720 = vunpack.c.l.s4 1983009808
        %v721 = vunpack.c.0.s8 %v720
        %v722 = vlaneseq
        %v723 = vshrl.u32 %v722, 7
        %v724 = vsub.s32 %v721, %v723
        %v725 = vrot.slane %v718, %v724
        %v726 = vcombine.low %v700, %v701
        %v728 = vunpack.c.l.s4 1983009808
        %v729 = vunpack.c.0.s8 %v728
        %v730 = vlaneseq
        %v731 = vshrl.u32 %v730, 7
        %v732 = vsub.s32 %v729, %v731
        %v733 = vrot.slane %v726, %v732
        %v734 = vcombine.low %v709, %v717
        %v735 = vcombine.high %v709, %v717
        %v737 = vunpack.c.l.s4 1934713408
        %v738 = vunpack.c.0.s8 %v737
        %v739 = vlaneseq
        %v740 = vshrl.u32 %v739, 7
        %v741 = vsub.s32 %v738, %v740
        %v742 = vrot.slane %v734, %v741
        %v744 = vunpack.c.l.s4 1934713408
        %v745 = vunpack.c.0.s8 %v744
        %v746 = vlaneseq
        %v747 = vshrl.u32 %v746, 7
        %v748 = vsub.s32 %v745, %v747
        %v749 = vrot.slane %v735, %v748
        %v750 = vcombine.low %v725, %v733
        %v751 = vcombine.high %v725, %v733
        %v753 = vunpack.c.l.s4 1934713408
        %v754 = vunpack.c.0.s8 %v753
        %v755 = vlaneseq
        %v756 = vshrl.u32 %v755, 7
        %v757 = vsub.s32 %v754, %v756
        %v758 = vrot.slane %v750, %v757
        %v760 = vunpack.c.l.s4 1934713408
        %v761 = vunpack.c.0.s8 %v760
        %v762 = vlaneseq
        %v763 = vshrl.u32 %v762, 7
        %v764 = vsub.s32 %v761, %v763
        %v765 = vrot.slane %v751, %v764
        %v766 = vcombine.low %v742, %v758
        %v767 = vcombine.high %v742, %v758
        %v768 = vcombine.low %v749, %v765
        %v769 = vcombine.high %v749, %v765
        %v770 = vpack.c.bf16 %v766, %v766
        %v771 = vpack.c.bf16 %v767, %v767
        %v772 = vpack.c.bf16 %v768, %v768
        %v773 = vpack.c.bf16 %v769, %v769
        %774 = vst.msk [vmem:[%s342] sm:$0xf] %vm563, %v770
        %775 = vst.msk [vmem:[%s342 + $0x4] sm:$0xf] %vm563, %v771
        %776 = vst.msk [vmem:[%s342 + $0x8] sm:$0xf] %vm563, %v772
        %777 = vst.msk [vmem:[%s342 + $0xc] sm:$0xf] %vm563, %v773
        %v778 = vld [vmem:[#allocation8] sm:$0xf]
        %v779 = vld [vmem:[#allocation8 + $0x4] sm:$0xf]
        %v780 = vld [vmem:[#allocation8 + $0x8] sm:$0xf]
        %v781 = vld [vmem:[#allocation8 + $0xc] sm:$0xf]
        %v786 = vunpack.c.l.b16 %v778
        %v787 = vunpack.c.l.b16 %v779
        %v788 = vunpack.c.l.b16 %v780
        %v789 = vunpack.c.l.b16 %v781
        %v790 = vpack.c.b16 %v787, %v786
        %v791 = vpack.c.b16 %v789, %v788
        %794 = vmatprep.subr.bf16.mxu0 0
        %795 = vmatpush1.bf16.msra.mxu0 0
        %796 = vmatprep.subr.bf16.mxu0 0
        %797 = vmatpush1.bf16.msra.mxu0 0
        %798 = vmatprep.subr.bf16.mxu0 0
        %799 = vmatpush1.bf16.msra.mxu0 0
        %800 = vmatprep.subr.bf16.mxu0 0
        %801 = vmatpush1.bf16.msra.mxu0 0
        %802 = vmatprep.subr.bf16.mxu0 0
        %803 = vmatpush1.bf16.msra.mxu0 0
        %804 = vmatprep.subr.bf16.mxu0 0
        %805 = vmatpush1.bf16.msra.mxu0 0
        %806 = vmatprep.subr.bf16.mxu0 0
        %807 = vmatpush1.bf16.msra.mxu0 %v791
        %808 = vmatprep.subr.bf16.mxu0 0
        %809 = vmatpush1.bf16.msra.mxu0 %v790
        %810 = vmatprep.subr.bf16.mxu0 0
        %811 = vmatpush2.bf16.msra.mxu0 0
        %812 = vmatprep.subr.bf16.mxu0 0
        %813 = vmatpush2.bf16.msra.mxu0 0
        %814 = vmatprep.subr.bf16.mxu0 0
        %815 = vmatpush2.bf16.msra.mxu0 0
        %816 = vmatprep.subr.bf16.mxu0 0
        %817 = vmatpush2.bf16.msra.mxu0 0
        %818 = vmatprep.subr.bf16.mxu0 0
        %819 = vmatpush2.bf16.msra.mxu0 0
        %820 = vmatprep.subr.bf16.mxu0 0
        %821 = vmatpush2.bf16.msra.mxu0 0
        %822 = vmatprep.subr.bf16.mxu0 0
        %823 = vmatpush2.bf16.msra.mxu0 0
        %824 = vmatprep.subr.bf16.mxu0 0
        %825 = vmatpush2.bf16.msra.mxu0 0
        %826 = vmatprep.mubr.bf16.mxu0 0
        %827 = vmatmul.mubr.bf16.gmra.mxu0 %v371
        %v828 = vpop.f32.mrf.mxu0
        %v829 = vadd.f32 0.0, %v828
        %v830 = vpop.f32.mrf.mxu0
        %v831 = vpop.f32.mrf.mxu0
        %v832 = vpop.f32.mrf.mxu0
        %833 = vdwg.mxu0
        %835 = vrot.lane.b32.xlu0 %v829, 120
        %v836 = vpop.permute.xlu0 %835
        %838 = vrot.lane.b32.xlu0 %v829, 112
        %v839 = vpop.permute.xlu0 %838
        %841 = vrot.lane.b32.xlu0 %v829, 104
        %v842 = vpop.permute.xlu0 %841
        %v844 = vcombine.low %v829, %v839
        %v845 = vcombine.high %v829, %v839
        %v847 = vunpack.c.l.s4 1983009808
        %v848 = vunpack.c.0.s8 %v847
        %v849 = vlaneseq
        %v850 = vshrl.u32 %v849, 7
        %v851 = vsub.s32 %v848, %v850
        %v852 = vrot.slane %v844, %v851
        %v854 = vunpack.c.l.s4 1983009808
        %v855 = vunpack.c.0.s8 %v854
        %v856 = vlaneseq
        %v857 = vshrl.u32 %v856, 7
        %v858 = vsub.s32 %v855, %v857
        %v859 = vrot.slane %v845, %v858
        %v860 = vcombine.low %v836, %v842
        %v861 = vcombine.high %v836, %v842
        %v863 = vunpack.c.l.s4 1983009808
        %v864 = vunpack.c.0.s8 %v863
        %v865 = vlaneseq
        %v866 = vshrl.u32 %v865, 7
        %v867 = vsub.s32 %v864, %v866
        %v868 = vrot.slane %v860, %v867
        %v870 = vunpack.c.l.s4 1983009808
        %v871 = vunpack.c.0.s8 %v870
        %v872 = vlaneseq
        %v873 = vshrl.u32 %v872, 7
        %v874 = vsub.s32 %v871, %v873
        %v875 = vrot.slane %v861, %v874
        %v876 = vcombine.low %v852, %v868
        %v877 = vcombine.high %v852, %v868
        %v879 = vunpack.c.l.s4 1934713408
        %v880 = vunpack.c.0.s8 %v879
        %v881 = vlaneseq
        %v882 = vshrl.u32 %v881, 7
        %v883 = vsub.s32 %v880, %v882
        %v884 = vrot.slane %v876, %v883
        %v886 = vunpack.c.l.s4 1934713408
        %v887 = vunpack.c.0.s8 %v886
        %v888 = vlaneseq
        %v889 = vshrl.u32 %v888, 7
        %v890 = vsub.s32 %v887, %v889
        %v891 = vrot.slane %v877, %v890
        %v892 = vcombine.low %v859, %v875
        %v893 = vcombine.high %v859, %v875
        %v895 = vunpack.c.l.s4 1934713408
        %v896 = vunpack.c.0.s8 %v895
        %v897 = vlaneseq
        %v898 = vshrl.u32 %v897, 7
        %v899 = vsub.s32 %v896, %v898
        %v900 = vrot.slane %v892, %v899
        %v902 = vunpack.c.l.s4 1934713408
        %v903 = vunpack.c.0.s8 %v902
        %v904 = vlaneseq
        %v905 = vshrl.u32 %v904, 7
        %v906 = vsub.s32 %v903, %v905
        %v907 = vrot.slane %v893, %v906
        %v908 = vcombine.high %v884, 0.0
        %v909 = vcombine.high %v891, 0.0
        %v910 = vcombine.high %v900, 0.0
        %v911 = vcombine.high %v907, 0.0
        %v912 = vcombine.low %v884, %v891
        %v914 = vunpack.c.l.s4 1983009808
        %v915 = vunpack.c.0.s8 %v914
        %v916 = vlaneseq
        %v917 = vshrl.u32 %v916, 7
        %v918 = vsub.s32 %v915, %v917
        %v919 = vrot.slane %v912, %v918
        %v920 = vcombine.low %v908, %v909
        %v922 = vunpack.c.l.s4 1983009808
        %v923 = vunpack.c.0.s8 %v922
        %v924 = vlaneseq
        %v925 = vshrl.u32 %v924, 7
        %v926 = vsub.s32 %v923, %v925
        %v927 = vrot.slane %v920, %v926
        %v928 = vcombine.low %v900, %v907
        %v930 = vunpack.c.l.s4 1983009808
        %v931 = vunpack.c.0.s8 %v930
        %v932 = vlaneseq
        %v933 = vshrl.u32 %v932, 7
        %v934 = vsub.s32 %v931, %v933
        %v935 = vrot.slane %v928, %v934
        %v936 = vcombine.low %v910, %v911
        %v938 = vunpack.c.l.s4 1983009808
        %v939 = vunpack.c.0.s8 %v938
        %v940 = vlaneseq
        %v941 = vshrl.u32 %v940, 7
        %v942 = vsub.s32 %v939, %v941
        %v943 = vrot.slane %v936, %v942
        %v944 = vcombine.low %v919, %v927
        %v945 = vcombine.high %v919, %v927
        %v947 = vunpack.c.l.s4 1934713408
        %v948 = vunpack.c.0.s8 %v947
        %v949 = vlaneseq
        %v950 = vshrl.u32 %v949, 7
        %v951 = vsub.s32 %v948, %v950
        %v952 = vrot.slane %v944, %v951
        %v954 = vunpack.c.l.s4 1934713408
        %v955 = vunpack.c.0.s8 %v954
        %v956 = vlaneseq
        %v957 = vshrl.u32 %v956, 7
        %v958 = vsub.s32 %v955, %v957
        %v959 = vrot.slane %v945, %v958
        %v960 = vcombine.low %v935, %v943
        %v961 = vcombine.high %v935, %v943
        %v963 = vunpack.c.l.s4 1934713408
        %v964 = vunpack.c.0.s8 %v963
        %v965 = vlaneseq
        %v966 = vshrl.u32 %v965, 7
        %v967 = vsub.s32 %v964, %v966
        %v968 = vrot.slane %v960, %v967
        %v970 = vunpack.c.l.s4 1934713408
        %v971 = vunpack.c.0.s8 %v970
        %v972 = vlaneseq
        %v973 = vshrl.u32 %v972, 7
        %v974 = vsub.s32 %v971, %v973
        %v975 = vrot.slane %v961, %v974
        %v976 = vcombine.low %v952, %v968
        %v977 = vcombine.high %v952, %v968
        %v978 = vcombine.low %v959, %v975
        %v979 = vcombine.high %v959, %v975
        %v980 = vpack.c.bf16 %v976, %v976
        %v981 = vpack.c.bf16 %v977, %v977
        %v982 = vpack.c.bf16 %v978, %v978
        %v983 = vpack.c.bf16 %v979, %v979
        %984 = vst.msk [vmem:[%s349] sm:$0xf] %vm563, %v980
        %985 = vst.msk [vmem:[%s349 + $0x4] sm:$0xf] %vm563, %v981
        %986 = vst.msk [vmem:[%s349 + $0x8] sm:$0xf] %vm563, %v982
        %987 = vst.msk [vmem:[%s349 + $0xc] sm:$0xf] %vm563, %v983
        %s988 = sand.u32 %s142, 1
        %s989 = scalar_lea.sflag [#allocation4], %s988
        %s990 = sand.u32 %s142, 1
        %s991 = smul.addr %s990, 16
        %s992 = scalar_lea.vmem [#allocation10], %s991
        %s993 = sand.u32 %s29, 1
        %s994 = scalar_lea.sflag [#allocation12], %s993
        %s995 = sand.u32 %s170, 1
        %s996 = smul.addr %s995, 16
        %s997 = scalar_lea.vmem [#allocation11], %s996
        %s998 = sand.u32 %s29, 1
        %s999 = scalar_lea.sflag [#allocation12], %s998
        %s1000 = sand.u32 %s198, 1
        %s1001 = smul.addr %s1000, 16
        %s1002 = scalar_lea.vmem [#allocation13], %s1001
        // Predicated region
        $region53: #{tpu_custom_call.1} parent=35 // pred_check
          %p1003 = pneg %p152
        $region54: #{tpu_custom_call.1} parent=35 // pred_check_branch
          %1005 = sbr.rel (%p1003) target = $region56
        $region55: #{tpu_custom_call.1} parent=35 // pred_region
          %s1007 = ssub.s32 256, 256
          %1008 = vsyncadd %s989, %s1007
          %s1009 = smul.addr %s33, 4
          %s1010 = sadd.s32 %s34, %s1009
          %s1011 = smul.addr %s1010, 64
          %s1012 = scalar_lea.hbm %s4, %s1011
          %s1013 = sshll.u32 %s992, 4
          %s1014 = int_to_ptr.vmem [resolvable:$true] %s1013
          %1019 = dma.vmem_to_hbm [thread:$0]  %s1014, 256, %s1012, %s989, 64, 64, 4
        $region56: #{tpu_custom_call.1} parent=35 // pred_fallthru
          _
        // Predicated region
        $region57: #{tpu_custom_call.1} parent=35 // pred_check
          %p1020 = pneg %p180
        $region58: #{tpu_custom_call.1} parent=35 // pred_check_branch
          %1022 = sbr.rel (%p1020) target = $region60
        $region59: #{tpu_custom_call.1} parent=35 // pred_region
          %s1024 = ssub.s32 256, 256
          %1025 = vsyncadd %s994, %s1024
          %s1026 = smul.addr %s33, 4
          %s1027 = sadd.s32 %s34, %s1026
          %s1028 = smul.addr %s1027, 64
          %s1029 = scalar_lea.hbm %s5, %s1028
          %s1030 = sshll.u32 %s997, 4
          %s1031 = int_to_ptr.vmem [resolvable:$true] %s1030
          %1036 = dma.vmem_to_hbm [thread:$0]  %s1031, 256, %s1029, %s994, 64, 64, 4
        $region60: #{tpu_custom_call.1} parent=35 // pred_fallthru
          _
        // Predicated region
        $region61: #{tpu_custom_call.1} parent=35 // pred_check
          %p1037 = pneg %p208
        $region62: #{tpu_custom_call.1} parent=35 // pred_check_branch
          %1039 = sbr.rel (%p1037) target = $region64
        $region63: #{tpu_custom_call.1} parent=35 // pred_region
          %s1041 = ssub.s32 256, 256
          %1042 = vsyncadd %s999, %s1041
          %s1043 = smul.addr %s33, 4
          %s1044 = sadd.s32 %s34, %s1043
          %s1045 = smul.addr %s1044, 64
          %s1046 = scalar_lea.hbm %s6, %s1045
          %s1047 = sshll.u32 %s1002, 4
          %s1048 = int_to_ptr.vmem [resolvable:$true] %s1047
          %1053 = dma.vmem_to_hbm [thread:$0]  %s1048, 256, %s1046, %s999, 64, 64, 4
        $region64: #{tpu_custom_call.1} parent=35 // pred_fallthru
          _
      $region36: #{tpu_custom_call.1} parent=5 // pred_fallthru
        _
      %p1054 = scmp.le.s32.totalorder 2, %s24
      // Predicated region
      $region65: #{tpu_custom_call.1} parent=5 // pred_check
        %p1055 = pneg %p1054
      $region66: #{tpu_custom_call.1} parent=5 // pred_check_branch
        %1057 = sbr.rel (%p1055) target = $region68
      $region67: #{tpu_custom_call.1} parent=5 // pred_region
        %s1058 = ssub.s32 %s24, 2
        // Predicated region
        $region69: #{tpu_custom_call.1} parent=67 // pred_check
          %p1059 = pneg %p158
        $region70: #{tpu_custom_call.1} parent=67 // pred_check_branch
          %1061 = sbr.rel (%p1059) target = $region72
        $region71: #{tpu_custom_call.1} parent=67 // pred_region
          %s1062 = sand.u32 %s143, 1
          %s1063 = scalar_lea.sflag [#allocation4], %s1062
          %s1064 = sand.u32 %s143, 1
          %s1065 = smul.addr %s1064, 16
          %s1066 = scalar_lea.vmem [#allocation10], %s1065
          %1067 = dma.done %s1063, 256
        $region72: #{tpu_custom_call.1} parent=67 // pred_fallthru
          _
        // Predicated region
        $region73: #{tpu_custom_call.1} parent=67 // pred_check
          %p1068 = pneg %p186
        $region74: #{tpu_custom_call.1} parent=67 // pred_check_branch
          %1070 = sbr.rel (%p1068) target = $region76
        $region75: #{tpu_custom_call.1} parent=67 // pred_region
          %s1071 = sand.u32 %s30, 1
          %s1072 = scalar_lea.sflag [#allocation12], %s1071
          %s1073 = sand.u32 %s171, 1
          %s1074 = smul.addr %s1073, 16
          %s1075 = scalar_lea.vmem [#allocation11], %s1074
          %1076 = dma.done %s1072, 256
        $region76: #{tpu_custom_call.1} parent=67 // pred_fallthru
          _
        // Predicated region
        $region77: #{tpu_custom_call.1} parent=67 // pred_check
          %p1077 = pneg %p214
        $region78: #{tpu_custom_call.1} parent=67 // pred_check_branch
          %1079 = sbr.rel (%p1077) target = $region80
        $region79: #{tpu_custom_call.1} parent=67 // pred_region
          %s1080 = sand.u32 %s30, 1
          %s1081 = scalar_lea.sflag [#allocation12], %s1080
          %s1082 = sand.u32 %s199, 1
          %s1083 = smul.addr %s1082, 16
          %s1084 = scalar_lea.vmem [#allocation13], %s1083
          %1085 = dma.done %s1081, 256
        $region80: #{tpu_custom_call.1} parent=67 // pred_fallthru
          _
      $region68: #{tpu_custom_call.1} parent=5 // pred_fallthru
        _
    $region6: #{tpu_custom_call.1} parent=1 // loop_footer
      %s28 = sadd.s32 1, %s24
    $region7: #{tpu_custom_call.1} parent=1 // loop_footer_branch
      %23 = sbr.rel target = $region3
    $region8: #{tpu_custom_call.1} parent=1 // loop_exit
      _
    %1086 = vsyncpa [#allocation3], 1
    %s1087 = scalar_lea.sflag [#allocation3], 1
    %1088 = vsyncpa %s1087, 1
    %1089 = vsyncpa [#allocation6], 1
    %1090 = vsyncpa [#allocation9], 1
    %1091 = vsyncpa [#allocation4], 1
    %s1092 = scalar_lea.sflag [#allocation4], 1
    %1093 = vsyncpa %s1092, 1
    %1094 = vsyncpa [#allocation12], 1
    %s1095 = scalar_lea.sflag [#allocation12], 1
    %1096 = vsyncpa %s1095, 1

</llo_original>
